<compile_context>
chip_gen: v7x
topology: tpu7x:2x2x1
jax: 0.10.0
libtpu: 0.0.40
codegen_flags: <defaults>
</compile_context>

<pallas_src>
import functools

import jax
import jax.numpy as jnp
from jax.experimental import pallas as pl
from jax.experimental.pallas import tpu as pltpu


def _resblock_kernel(dt_ref, x_ref, w_ref, b_ref, o_ref, *, double_identity):
    # dt_ref: SMEM (1,) f32; x_ref: (tb, in_dim); w_ref: (in_dim, out_dim);
    # b_ref: (1, out_dim); o_ref: (tb, out_dim).
    x = x_ref[...]
    # MXU matmul, always accumulating in f32 (inputs may be f32 or bf16).
    z = jnp.dot(x, w_ref[...], preferred_element_type=jnp.float32)
    z = z + b_ref[...].astype(jnp.float32)
    feats = jnp.tanh(z)                       # EUP, f32
    xf = x.astype(jnp.float32)                # residual path stays in f32
    if double_identity:
        # cat([x, x], dim=1). This lane copy is free filler while the kernel
        # is HBM-bound; revisit only after layer fusion makes it VMEM-resident.
        identity = jnp.concatenate([xf, xf], axis=1)
    else:
        identity = xf
    dt = dt_ref[0]
    o_ref[...] = (dt * feats + identity).astype(o_ref.dtype)


def _round_up(v, m):
    return ((v + m - 1) // m) * m


def _pick_block_batch(B, in_dim, out_dim, itemsize, budget_bytes=16 << 20):
    """Choose a batch tile: full (padded to 8) for small batches, otherwise
    512..2048 rows (multiple of 256 -> MXU aligned on v5e/v6e/v7x), capped by
    a VMEM budget so double-buffered x/out + resident W fit comfortably."""
    full = _round_up(B, 8)
    if full <= 512:
        return full

    def need(bb):
        return (2 * bb * (in_dim + out_dim) * itemsize      # x + out, 2x buffered
                + in_dim * out_dim * itemsize               # W resident
                + out_dim * 4)                              # bias

    bb = 512
    while bb * 2 <= 2048 and need(bb * 2) <= budget_bytes and full >= bb * 4:
        bb *= 2
    return bb


def resblock_forward(x, w, b, dt, *, block_batch=None, interpret=False):
    """Pallas ResBlock forward.

    x:  (B, in_dim)  f32 or bf16 (bf16 = "streaming" mode; accumulation f32)
    w:  (in_dim, out_dim) same family as x (transposed PyTorch Linear weight)
    b:  (1, out_dim) f32
    dt: (1,) f32 scalar (resnet_dt parameter)
    """
    B, in_dim = x.shape
    out_dim = w.shape[1]
    assert in_dim == out_dim or in_dim * 2 == out_dim, (
        f"out_dim ({out_dim}) must equal in_dim ({in_dim}) or 2*in_dim")
    double_identity = (in_dim * 2 == out_dim)

    if b.ndim == 1:
        b = b.reshape(1, out_dim)
    dt = jnp.asarray(dt, jnp.float32).reshape(1)

    x_bytes = jnp.dtype(x.dtype).itemsize
    w_bytes = jnp.dtype(w.dtype).itemsize

    if block_batch is None:
        block_batch = _pick_block_batch(B, in_dim, out_dim, x_bytes)
    block_batch = max(8, _round_up(int(block_batch), 8))

    # Pad ragged batches so the grid tiles evenly; slice the result back.
    B_pad = _round_up(B, block_batch)
    if B_pad != B:
        x = jnp.pad(x, ((0, B_pad - B), (0, 0)))
    grid = (B_pad // block_batch,)

    # VMEM footprint: x/out double-buffered by the pipeline, W/bias resident.
    vmem_need = (2 * block_batch * in_dim * x_bytes
                 + 2 * block_batch * out_dim * x_bytes
                 + in_dim * out_dim * w_bytes
                 + out_dim * jnp.dtype(b.dtype).itemsize)
    vmem_limit = int(min(max(2 * vmem_need, 32 << 20), 48 << 20))

    cost = pl.CostEstimate(
        flops=2 * B_pad * in_dim * out_dim,
        transcendentals=B_pad * out_dim,
        bytes_accessed=(B_pad * in_dim * x_bytes
                        + B_pad * out_dim * x_bytes
                        + in_dim * out_dim * w_bytes
                        + out_dim * 4 + 4),
    )

    kernel = functools.partial(_resblock_kernel, double_identity=double_identity)

    def build(single_buffer_resident):
        # W and bias have constant index maps; single-buffer them so the
        # pipeline does not allocate a useless second VMEM copy.
        resident_kwargs = (
            dict(pipeline_mode=pl.Buffered(1)) if single_buffer_resident else {})
        in_specs = [
            pl.BlockSpec(memory_space=pltpu.SMEM),                      # dt
            pl.BlockSpec((block_batch, in_dim), lambda i: (i, 0)),      # x tile
            pl.BlockSpec((in_dim, out_dim), lambda i: (0, 0),
                         **resident_kwargs),                            # full W
            pl.BlockSpec((1, out_dim), lambda i: (0, 0),
                         **resident_kwargs),                            # bias
        ]
        return pl.pallas_call(
            kernel,
            out_shape=jax.ShapeDtypeStruct((B_pad, out_dim), x.dtype),
            grid=grid,
            in_specs=in_specs,
            out_specs=pl.BlockSpec((block_batch, out_dim), lambda i: (i, 0)),
            compiler_params=pltpu.CompilerParams(
                dimension_semantics=("parallel",),
                vmem_limit_bytes=vmem_limit),
            cost_estimate=cost,
            interpret=interpret,
        )

    try:
        out = build(True)(dt, x, w, b)
    except Exception:
        # Safety net if Buffered(1) is not supported by this jax build.
        out = build(False)(dt, x, w, b)

    return out[:B] if B_pad != B else out


def _init_params(key, in_dim, out_dim, resnet_dt=True):
    """Deterministic synthetic init matching nn.Linear's parameter shapes."""
    kw, kb, kd = jax.random.split(key, 3)
    bound = 1.0 / jnp.sqrt(jnp.float32(in_dim))
    # PyTorch Linear weight is (out_dim, in_dim); store transposed for x @ W.
    w = jax.random.uniform(kw, (in_dim, out_dim), jnp.float32, -bound, bound)
    b = jax.random.uniform(kb, (1, out_dim), jnp.float32, -bound, bound)
    if resnet_dt:
        # torch.FloatTensor(1) is uninitialized; use a deterministic value.
        dt = jax.random.uniform(kd, (1,), jnp.float32, 0.0, 1.0)
    else:
        dt = jnp.ones((1,), jnp.float32)
    return w, b, dt


def _reference(x, w, b, dt, in_dim, out_dim):
    feats = jnp.tanh(x @ w + b)
    identity = jnp.concatenate([x, x], axis=1) if in_dim * 2 == out_dim else x
    return dt[0] * feats + identity


if __name__ == "__main__":
    key = jax.random.PRNGKey(0)
    ok = True

    def check(B, in_dim, out_dim, k, dtype=jnp.float32, atol=1e-5, rtol=1e-5,
              block_batch=None):
        k_x, k_p = jax.random.split(k)
        x = jax.random.normal(k_x, (B, in_dim), jnp.float32)
        w, b, dt = _init_params(k_p, in_dim, out_dim, resnet_dt=True)
        ref = _reference(x, w, b, dt, in_dim, out_dim)
        out = jax.block_until_ready(
            resblock_forward(x.astype(dtype), w.astype(dtype), b, dt,
                             block_batch=block_batch))
        return bool(jnp.allclose(out.astype(jnp.float32), ref,
                                 atol=atol, rtol=rtol))

    k1, k2, k3, key = jax.random.split(key, 4)

    # Case 1: out_dim == 2*in_dim (residual uses cat([x, x], dim=1)), f32.
    ok &= check(8, 32, 64, k1)

    # Case 2: out_dim == in_dim (plain residual), f32.
    ok &= check(8, 32, 32, k2)

    # Case 3: ragged batch with grid > 1 (tiling + padding path) and
    # bf16-streamed x/W with f32 accumulation (looser tolerance).
    ok &= check(1030, 32, 64, k3, dtype=jnp.bfloat16, atol=5e-2, rtol=5e-2,
                block_batch=512)

    print("KERNEL_OK" if ok else "KERNEL_MISMATCH")
</pallas_src>

<mosaic_0001>
module attributes {stable_mosaic.version = 11 : i64} {
  func.func @_resblock_kernel(%arg0: i32, %arg1: memref<1xf32, #tpu.memory_space<smem>>, %arg2: memref<8x32xf32, #tpu.memory_space<vmem>>, %arg3: memref<32x64xf32, #tpu.memory_space<vmem>>, %arg4: memref<1x64xf32, #tpu.memory_space<vmem>>, %arg5: memref<8x64xf32, #tpu.memory_space<vmem>>) attributes {dimension_semantics = [#tpu.dimension_semantics<parallel>], iteration_bounds = array<i64: 1>, scalar_prefetch = 0 : i64, scratch_operands = 0 : i64, tpu.core_type = #tpu.core_type<tc>, window_params = [{transform_indices = @transform_0, window_bounds = array<i64: 1>}, {transform_indices = @transform_1, window_bounds = array<i64: 8, 32>}, {pipeline_mode = #tpu.pipeline_mode<synchronous>, transform_indices = @transform_2, window_bounds = array<i64: 32, 64>}, {pipeline_mode = #tpu.pipeline_mode<synchronous>, transform_indices = @transform_3, window_bounds = array<i64: 1, 64>}, {transform_indices = @transform_4, window_bounds = array<i64: 8, 64>}]} {
    %c0 = arith.constant 0 : index
    %c0_0 = arith.constant 0 : index
    %0 = vector.load %arg2[%c0, %c0_0] : memref<8x32xf32, #tpu.memory_space<vmem>>, vector<8x32xf32>
    %c0_1 = arith.constant 0 : index
    %c0_2 = arith.constant 0 : index
    %1 = vector.load %arg3[%c0_1, %c0_2] : memref<32x64xf32, #tpu.memory_space<vmem>>, vector<32x64xf32>
    %cst = arith.constant dense<0.000000e+00> : vector<8x64xf32>
    %2 = tpu.matmul %0, %1, %cst {dimension_numbers = #tpu.dot_dimension_numbers<[1], [0], [0], [1], [0, 0, 1, 1], [], []>} : vector<8x32xf32>, vector<32x64xf32>, vector<8x64xf32> -> vector<8x64xf32>
    %c0_3 = arith.constant 0 : index
    %c0_4 = arith.constant 0 : index
    %3 = vector.load %arg4[%c0_3, %c0_4] : memref<1x64xf32, #tpu.memory_space<vmem>>, vector<1x64xf32>
    %4 = vector.broadcast %3 : vector<1x64xf32> to vector<8x64xf32>
    %5 = arith.addf %2, %4 : vector<8x64xf32>
    %6 = math.tanh %5 : vector<8x64xf32>
    %7 = tpu.concatenate %0, %0 in 1 : vector<8x32xf32>, vector<8x32xf32> -> vector<8x64xf32>
    %c0_5 = arith.constant 0 : index
    %8 = memref.load %arg1[%c0_5] : memref<1xf32, #tpu.memory_space<smem>>
    %9 = vector.broadcast %8 : f32 to vector<8x64xf32>
    %10 = arith.mulf %9, %6 : vector<8x64xf32>
    %11 = arith.addf %10, %7 : vector<8x64xf32>
    %c0_6 = arith.constant 0 : index
    %c0_7 = arith.constant 0 : index
    %12 = vector.load %arg5[%c0_6, %c0_7] : memref<8x64xf32, #tpu.memory_space<vmem>>, vector<8x64xf32>
    tpu.vector_store %arg5[%c0_6, %c0_7], %11 {strides = array<i32>} : memref<8x64xf32, #tpu.memory_space<vmem>>, vector<8x64xf32>,
    return
  }
  func.func @transform_0(%arg0: i32) -> i32 {
    %c0_i32 = arith.constant 0 : i32
    %c0_i32_0 = arith.constant 0 : i32
    return %c0_i32 : i32
  }
  func.func @transform_1(%arg0: i32) -> (i32, i32) {
    %c0_i32 = arith.constant 0 : i32
    %c0_i32_0 = arith.constant 0 : i32
    return %arg0, %c0_i32 : i32, i32
  }
  func.func @transform_2(%arg0: i32) -> (i32, i32) {
    %c0_i32 = arith.constant 0 : i32
    %c0_i32_0 = arith.constant 0 : i32
    %c0_i32_1 = arith.constant 0 : i32
    return %c0_i32, %c0_i32_0 : i32, i32
  }
  func.func @transform_3(%arg0: i32) -> (i32, i32) {
    %c0_i32 = arith.constant 0 : i32
    %c0_i32_0 = arith.constant 0 : i32
    %c0_i32_1 = arith.constant 0 : i32
    return %c0_i32, %c0_i32_0 : i32, i32
  }
  func.func @transform_4(%arg0: i32) -> (i32, i32) {
    %c0_i32 = arith.constant 0 : i32
    %c0_i32_0 = arith.constant 0 : i32
    return %arg0, %c0_i32 : i32, i32
  }
}

module attributes {stable_mosaic.version = 11 : i64} {
  func.func @_resblock_kernel(%arg0: i32, %arg1: memref<1xf32, #tpu.memory_space<smem>>, %arg2: memref<8x32xf32, #tpu.memory_space<vmem>>, %arg3: memref<32x64xf32, #tpu.memory_space<vmem>>, %arg4: memref<1x64xf32, #tpu.memory_space<vmem>>, %arg5: memref<8x64xf32, #tpu.memory_space<vmem>>) attributes {dimension_semantics = [#tpu.dimension_semantics<parallel>], iteration_bounds = array<i64: 1>, scalar_prefetch = 0 : i64, scratch_operands = 0 : i64, tpu.core_type = #tpu.core_type<tc>, window_params = [{transform_indices = @transform_0, window_bounds = array<i64: 1>}, {transform_indices = @transform_1, window_bounds = array<i64: 8, 32>}, {pipeline_mode = #tpu.pipeline_mode<synchronous>, transform_indices = @transform_2, window_bounds = array<i64: 32, 64>}, {pipeline_mode = #tpu.pipeline_mode<synchronous>, transform_indices = @transform_3, window_bounds = array<i64: 1, 64>}, {transform_indices = @transform_4, window_bounds = array<i64: 8, 64>}]} {
    %c0 = arith.constant 0 : index
    %c0_0 = arith.constant 0 : index
    %0 = vector.load %arg2[%c0, %c0_0] : memref<8x32xf32, #tpu.memory_space<vmem>>, vector<8x32xf32>
    %c0_1 = arith.constant 0 : index
    %c0_2 = arith.constant 0 : index
    %1 = vector.load %arg3[%c0_1, %c0_2] : memref<32x64xf32, #tpu.memory_space<vmem>>, vector<32x64xf32>
    %cst = arith.constant dense<0.000000e+00> : vector<8x64xf32>
    %2 = tpu.matmul %0, %1, %cst {dimension_numbers = #tpu.dot_dimension_numbers<[1], [0], [0], [1], [0, 0, 1, 1], [], []>} : vector<8x32xf32>, vector<32x64xf32>, vector<8x64xf32> -> vector<8x64xf32>
    %c0_3 = arith.constant 0 : index
    %c0_4 = arith.constant 0 : index
    %3 = vector.load %arg4[%c0_3, %c0_4] : memref<1x64xf32, #tpu.memory_space<vmem>>, vector<1x64xf32>
    %4 = vector.broadcast %3 : vector<1x64xf32> to vector<8x64xf32>
    %5 = arith.addf %2, %4 : vector<8x64xf32>
    %6 = math.tanh %5 : vector<8x64xf32>
    %7 = tpu.concatenate %0, %0 in 1 : vector<8x32xf32>, vector<8x32xf32> -> vector<8x64xf32>
    %c0_5 = arith.constant 0 : index
    %8 = memref.load %arg1[%c0_5] : memref<1xf32, #tpu.memory_space<smem>>
    %9 = vector.broadcast %8 : f32 to vector<8x64xf32>
    %10 = arith.mulf %9, %6 : vector<8x64xf32>
    %11 = arith.addf %10, %7 : vector<8x64xf32>
    %c0_6 = arith.constant 0 : index
    %c0_7 = arith.constant 0 : index
    %12 = vector.load %arg5[%c0_6, %c0_7] : memref<8x64xf32, #tpu.memory_space<vmem>>, vector<8x64xf32>
    tpu.vector_store %arg5[%c0_6, %c0_7], %11 {strides = array<i32>} : memref<8x64xf32, #tpu.memory_space<vmem>>, vector<8x64xf32>,
    return
  }
  func.func @transform_0(%arg0: i32) -> i32 {
    %c0_i32 = arith.constant 0 : i32
    %c0_i32_0 = arith.constant 0 : i32
    return %c0_i32 : i32
  }
  func.func @transform_1(%arg0: i32) -> (i32, i32) {
    %c0_i32 = arith.constant 0 : i32
    %c0_i32_0 = arith.constant 0 : i32
    return %arg0, %c0_i32 : i32, i32
  }
  func.func @transform_2(%arg0: i32) -> (i32, i32) {
    %c0_i32 = arith.constant 0 : i32
    %c0_i32_0 = arith.constant 0 : i32
    %c0_i32_1 = arith.constant 0 : i32
    return %c0_i32, %c0_i32_0 : i32, i32
  }
  func.func @transform_3(%arg0: i32) -> (i32, i32) {
    %c0_i32 = arith.constant 0 : i32
    %c0_i32_0 = arith.constant 0 : i32
    %c0_i32_1 = arith.constant 0 : i32
    return %c0_i32, %c0_i32_0 : i32, i32
  }
  func.func @transform_4(%arg0: i32) -> (i32, i32) {
    %c0_i32 = arith.constant 0 : i32
    %c0_i32_0 = arith.constant 0 : i32
    return %arg0, %c0_i32 : i32, i32
  }
}

</mosaic_0001>

<llo_original>
// kernel: tpu_custom_call.1
$region0: #{tpu_custom_call.1}
  #allocation0 [shape = 'u32[]', space=smem, size = 0x4, offset = 0x4, fixed_abs, tag = 'smem constant byte address 0x4 - core index']
  #allocation1 [shape = 'u32[144,128]{1,0:T(1,128)}', space=vmem, size = 0x12000, scoped, tag = 'internal scratch']
  #allocation2 [shape = 'f32[1]{0:T(128)S(6)}', space=smem, size = 0x200, scoped, tag = 'scoped memory for tpu_custom_call.1']
  %s0 = inlined_call_operand.<no memory space> [shape: f32[1], index: 0, kind: input, shape index: {}]
  %s1 = inlined_call_operand.hbm [shape: f32[8,32], index: 1, kind: input, shape index: {}]
  %s2 = inlined_call_operand.hbm [shape: f32[32,64], index: 2, kind: input, shape index: {}]
  %s3 = inlined_call_operand.vmem [shape: f32[1,64], index: 3, kind: input, shape index: {}]
  %s4 = inlined_call_operand.hbm [shape: f32[8,64], index: 4, kind: output, shape index: {}]
  %s5 = sld [smem:[#allocation0]]
  $region34: #{tpu_custom_call.1} parent=0
    _
  %s7 = ssub.s32 1, %s5
  %s8 = scalar_select 0, %s7, %s5
  %9 = sst [smem:[#allocation2]] %s0
  $region1: #{tpu_custom_call.1} parent=0
    #allocation3 [shape = 'u8[4096]{0}', space=vmem, size = 0x1000, scoped, tag = 'input window, operand 1, single buffered']
    #allocation4 [shape = 's32[1]{0}', space=sflag, size = 0x4, scoped, tag = 'scoped memory for tpu_custom_call.1']
    #allocation5 [shape = 's32[1]{0}', space=sflag, size = 0x4, scoped, tag = 'scoped memory for tpu_custom_call.1']
    #allocation6 [shape = 'u8[16384]{0}', space=vmem, size = 0x4000, scoped, tag = 'input window, operand 2, single buffered']
    #allocation7 [shape = 's32[1]{0}', space=sflag, size = 0x4, scoped, tag = 'scoped memory for tpu_custom_call.1']
    #allocation8 [shape = 'u8[4096]{0}', space=vmem, size = 0x1000, scoped, tag = 'output window, operand 0, single buffered']
    %10 = vsyncpa [#allocation4], 0
    %11 = vsyncpa [#allocation7], 0
    %12 = vsyncpa [#allocation5], 0
    // Predicated region
    $region2: #{tpu_custom_call.1} parent=1 // pred_check
      _
    $region3: #{tpu_custom_call.1} parent=1 // pred_check_branch
      %14 = sbr.rel (0) target = $region5
    $region4: #{tpu_custom_call.1} parent=1 // pred_region
      _
    $region5: #{tpu_custom_call.1} parent=1 // pred_fallthru
      _
    // Predicated region
    $region6: #{tpu_custom_call.1} parent=1 // pred_check
      _
    $region7: #{tpu_custom_call.1} parent=1 // pred_check_branch
      %16 = sbr.rel (0) target = $region9
    $region8: #{tpu_custom_call.1} parent=1 // pred_region
      %s18 = ssub.s32 128, 128
      %19 = vsyncadd [#allocation4], %s18
      %s21 = sshll.u32 [#allocation3], 4
      %s22 = int_to_ptr.vmem [resolvable:$true] %s21
      %24 = dma.hbm_to_vmem [thread:$0]  %s1, 128, %s22, [#allocation4]
    $region9: #{tpu_custom_call.1} parent=1 // pred_fallthru
      _
    // Predicated region
    $region10: #{tpu_custom_call.1} parent=1 // pred_check
      _
    $region11: #{tpu_custom_call.1} parent=1 // pred_check_branch
      %26 = sbr.rel (0) target = $region13
    $region12: #{tpu_custom_call.1} parent=1 // pred_region
      %s28 = ssub.s32 512, 512
      %29 = vsyncadd [#allocation7], %s28
      %s30 = sshll.u32 [#allocation6], 4
      %s31 = int_to_ptr.vmem [resolvable:$true] %s30
      %36 = dma.hbm_to_vmem [thread:$0]  %s2, 512, %s31, [#allocation7], 128, 128, 8
    $region13: #{tpu_custom_call.1} parent=1 // pred_fallthru
      _
    // Predicated region
    $region14: #{tpu_custom_call.1} parent=1 // pred_check
      _
    $region15: #{tpu_custom_call.1} parent=1 // pred_check_branch
      %38 = sbr.rel (0) target = $region17
    $region16: #{tpu_custom_call.1} parent=1 // pred_region
      _
    $region17: #{tpu_custom_call.1} parent=1 // pred_fallthru
      _
    // Predicated region
    $region18: #{tpu_custom_call.1} parent=1 // pred_check
      _
    $region19: #{tpu_custom_call.1} parent=1 // pred_check_branch
      %40 = sbr.rel (0) target = $region21
    $region20: #{tpu_custom_call.1} parent=1 // pred_region
      %41 = dma.done [#allocation4], 128
    $region21: #{tpu_custom_call.1} parent=1 // pred_fallthru
      _
    // Predicated region
    $region22: #{tpu_custom_call.1} parent=1 // pred_check
      _
    $region23: #{tpu_custom_call.1} parent=1 // pred_check_branch
      %43 = sbr.rel (0) target = $region25
    $region24: #{tpu_custom_call.1} parent=1 // pred_region
      %44 = dma.done [#allocation7], 512
    $region25: #{tpu_custom_call.1} parent=1 // pred_fallthru
      _
    %v45 = vld [vmem:[#allocation3] sm:$0xff]
    %v46 = vld [vmem:[#allocation6] sm:$0xff]
    %v47 = vld [vmem:[#allocation6 + $0x8] sm:$0xff]
    %v48 = vld [vmem:[#allocation6 + $0x10] sm:$0xff]
    %v49 = vld [vmem:[#allocation6 + $0x18] sm:$0xff]
    %v50 = vld [vmem:[%s3] sm:$0x1]
    %v52 = vlaneseq
    %v53 = vshrl.u32 %v52, 7
    %v54 = vsub.s32 0, %v53
    %v55 = vrot.slane %v50, %v54
    %vm57 = vcmask 261120
    %v59 = vsel %vm57, %v45, 0
    %61 = vmatprep.subr.mxu0 0.0
    %62 = vmatpush1.msra.mxu0 %v46
    %63 = vmatprep.subr.mxu0 0.0
    %64 = vmatpush1.msra.mxu0 %v47
    %65 = vmatprep.subr.mxu0 0.0
    %66 = vmatpush1.msra.mxu0 %v48
    %67 = vmatprep.subr.mxu0 0.0
    %68 = vmatpush1.msra.mxu0 %v49
    %69 = vmatprep.subr.mxu0 0.0
    %70 = vmatpush1.msra.mxu0 0.0
    %71 = vmatprep.subr.mxu0 0.0
    %72 = vmatpush1.msra.mxu0 0.0
    %73 = vmatprep.subr.mxu0 0.0
    %74 = vmatpush1.msra.mxu0 0.0
    %75 = vmatprep.subr.mxu0 0.0
    %76 = vmatpush1.msra.mxu0 0.0
    %77 = vmatprep.subr.mxu0 0.0
    %78 = vmatpush1.msra.mxu0 0.0
    %79 = vmatprep.subr.mxu0 0.0
    %80 = vmatpush1.msra.mxu0 0.0
    %81 = vmatprep.subr.mxu0 0.0
    %82 = vmatpush1.msra.mxu0 0.0
    %83 = vmatprep.subr.mxu0 0.0
    %84 = vmatpush1.msra.mxu0 0.0
    %85 = vmatprep.subr.mxu0 0.0
    %86 = vmatpush1.msra.mxu0 0.0
    %87 = vmatprep.subr.mxu0 0.0
    %88 = vmatpush1.msra.mxu0 0.0
    %89 = vmatprep.subr.mxu0 0.0
    %90 = vmatpush1.msra.mxu0 0.0
    %91 = vmatprep.subr.mxu0 0.0
    %92 = vmatpush1.msra.mxu0 0.0
    %93 = vmatprep.subr.mxu0 0.0
    %94 = vmatpush1.msra.mxu0 0.0
    %95 = vmatprep.subr.mxu0 0.0
    %96 = vmatpush1.msra.mxu0 0.0
    %97 = vmatprep.subr.mxu0 0.0
    %98 = vmatpush1.msra.mxu0 0.0
    %99 = vmatprep.subr.mxu0 0.0
    %100 = vmatpush1.msra.mxu0 0.0
    %101 = vmatprep.subr.mxu0 0.0
    %102 = vmatpush1.msra.mxu0 0.0
    %103 = vmatprep.subr.mxu0 0.0
    %104 = vmatpush1.msra.mxu0 0.0
    %105 = vmatprep.subr.mxu0 0.0
    %106 = vmatpush1.msra.mxu0 0.0
    %107 = vmatprep.subr.mxu0 0.0
    %108 = vmatpush1.msra.mxu0 0.0
    %109 = vmatprep.subr.mxu0 0.0
    %110 = vmatpush1.msra.mxu0 0.0
    %111 = vmatprep.subr.mxu0 0.0
    %112 = vmatpush1.msra.mxu0 0.0
    %113 = vmatprep.subr.mxu0 0.0
    %114 = vmatpush1.msra.mxu0 0.0
    %115 = vmatprep.subr.mxu0 0.0
    %116 = vmatpush1.msra.mxu0 0.0
    %117 = vmatprep.subr.mxu0 0.0
    %118 = vmatpush1.msra.mxu0 0.0
    %119 = vmatprep.subr.mxu0 0.0
    %120 = vmatpush1.msra.mxu0 0.0
    %121 = vmatprep.subr.mxu0 0.0
    %122 = vmatpush1.msra.mxu0 0.0
    %123 = vmatprep.subr.mxu0 0.0
    %124 = vmatpush1.msra.mxu0 0.0
    %125 = vmatprep.mubr.f32.mxu0 0.0
    %126 = vmatmul.mubr.f32.gmra.mrb[0].mxu0 %v59
    %v127 = vpop.f32.mrb[0].mxu0
    %v128 = vadd.f32 %v55, %v127
    %v129 = vpop.f32.mrb[0].mxu0
    %130 = vdwg.mxu0
    %v131 = vtanh.pop %v128
    %132 = vrot.lane.b32.xlu0 %v45, 32
    %v133 = vpop.permute.xlu0 %132
    %v135 = vsel %vm57, %v45, %v133
    %s136 = sld [smem:[#allocation2]]
    %v137 = vstv %s136
    %v138 = vmul.f32 %v137, %v131
    %v139 = vadd.f32 %v138, %v135
    %vm140 = vcmask 523264
    %141 = vst.msk [vmem:[#allocation8] sm:$0xff] %vm140, %v139
    // Predicated region
    $region26: #{tpu_custom_call.1} parent=1 // pred_check
      _
    $region27: #{tpu_custom_call.1} parent=1 // pred_check_branch
      %143 = sbr.rel (0) target = $region29
    $region28: #{tpu_custom_call.1} parent=1 // pred_region
      %s145 = ssub.s32 128, 128
      %146 = vsyncadd [#allocation5], %s145
      %s148 = sshll.u32 [#allocation8], 4
      %s149 = int_to_ptr.vmem [resolvable:$true] %s148
      %151 = dma.vmem_to_hbm [thread:$0]  %s149, 128, %s4, [#allocation5]
    $region29: #{tpu_custom_call.1} parent=1 // pred_fallthru
      _
    // Predicated region
    $region30: #{tpu_custom_call.1} parent=1 // pred_check
      _
    $region31: #{tpu_custom_call.1} parent=1 // pred_check_branch
      %153 = sbr.rel (0) target = $region33
    $region32: #{tpu_custom_call.1} parent=1 // pred_region
      %154 = dma.done [#allocation5], 128
    $region33: #{tpu_custom_call.1} parent=1 // pred_fallthru
      _
    %155 = vsyncpa [#allocation4], 1
    %156 = vsyncpa [#allocation7], 1
    %157 = vsyncpa [#allocation5], 1

// kernel: tpu_custom_call.1
$region0: #{tpu_custom_call.1}
  #allocation0 [shape = 'u32[]', space=smem, size = 0x4, offset = 0x4, fixed_abs, tag = 'smem constant byte address 0x4 - core index']
  #allocation1 [shape = 'u32[144,128]{1,0:T(1,128)}', space=vmem, size = 0x12000, scoped, tag = 'internal scratch']
  #allocation2 [shape = 'f32[1]{0:T(128)S(6)}', space=smem, size = 0x200, scoped, tag = 'scoped memory for tpu_custom_call.1']
  %s0 = inlined_call_operand.<no memory space> [shape: f32[1], index: 0, kind: input, shape index: {}]
  %s1 = inlined_call_operand.hbm [shape: f32[8,32], index: 1, kind: input, shape index: {}]
  %s2 = inlined_call_operand.hbm [shape: f32[32,64], index: 2, kind: input, shape index: {}]
  %s3 = inlined_call_operand.vmem [shape: f32[1,64], index: 3, kind: input, shape index: {}]
  %s4 = inlined_call_operand.hbm [shape: f32[8,64], index: 4, kind: output, shape index: {}]
  %s5 = sld [smem:[#allocation0]]
  $region34: #{tpu_custom_call.1} parent=0
    _
  %s7 = ssub.s32 1, %s5
  %s8 = scalar_select 0, %s7, %s5
  %9 = sst [smem:[#allocation2]] %s0
  $region1: #{tpu_custom_call.1} parent=0
    #allocation3 [shape = 'u8[4096]{0}', space=vmem, size = 0x1000, scoped, tag = 'input window, operand 1, single buffered']
    #allocation4 [shape = 's32[1]{0}', space=sflag, size = 0x4, scoped, tag = 'scoped memory for tpu_custom_call.1']
    #allocation5 [shape = 's32[1]{0}', space=sflag, size = 0x4, scoped, tag = 'scoped memory for tpu_custom_call.1']
    #allocation6 [shape = 'u8[16384]{0}', space=vmem, size = 0x4000, scoped, tag = 'input window, operand 2, single buffered']
    #allocation7 [shape = 's32[1]{0}', space=sflag, size = 0x4, scoped, tag = 'scoped memory for tpu_custom_call.1']
    #allocation8 [shape = 'u8[4096]{0}', space=vmem, size = 0x1000, scoped, tag = 'output window, operand 0, single buffered']
    %10 = vsyncpa [#allocation4], 0
    %11 = vsyncpa [#allocation7], 0
    %12 = vsyncpa [#allocation5], 0
    // Predicated region
    $region2: #{tpu_custom_call.1} parent=1 // pred_check
      _
    $region3: #{tpu_custom_call.1} parent=1 // pred_check_branch
      %14 = sbr.rel (0) target = $region5
    $region4: #{tpu_custom_call.1} parent=1 // pred_region
      _
    $region5: #{tpu_custom_call.1} parent=1 // pred_fallthru
      _
    // Predicated region
    $region6: #{tpu_custom_call.1} parent=1 // pred_check
      _
    $region7: #{tpu_custom_call.1} parent=1 // pred_check_branch
      %16 = sbr.rel (0) target = $region9
    $region8: #{tpu_custom_call.1} parent=1 // pred_region
      %s18 = ssub.s32 128, 128
      %19 = vsyncadd [#allocation4], %s18
      %s21 = sshll.u32 [#allocation3], 4
      %s22 = int_to_ptr.vmem [resolvable:$true] %s21
      %24 = dma.hbm_to_vmem [thread:$0]  %s1, 128, %s22, [#allocation4]
    $region9: #{tpu_custom_call.1} parent=1 // pred_fallthru
      _
    // Predicated region
    $region10: #{tpu_custom_call.1} parent=1 // pred_check
      _
    $region11: #{tpu_custom_call.1} parent=1 // pred_check_branch
      %26 = sbr.rel (0) target = $region13
    $region12: #{tpu_custom_call.1} parent=1 // pred_region
      %s28 = ssub.s32 512, 512
      %29 = vsyncadd [#allocation7], %s28
      %s30 = sshll.u32 [#allocation6], 4
      %s31 = int_to_ptr.vmem [resolvable:$true] %s30
      %36 = dma.hbm_to_vmem [thread:$0]  %s2, 512, %s31, [#allocation7], 128, 128, 8
    $region13: #{tpu_custom_call.1} parent=1 // pred_fallthru
      _
    // Predicated region
    $region14: #{tpu_custom_call.1} parent=1 // pred_check
      _
    $region15: #{tpu_custom_call.1} parent=1 // pred_check_branch
      %38 = sbr.rel (0) target = $region17
    $region16: #{tpu_custom_call.1} parent=1 // pred_region
      _
    $region17: #{tpu_custom_call.1} parent=1 // pred_fallthru
      _
    // Predicated region
    $region18: #{tpu_custom_call.1} parent=1 // pred_check
      _
    $region19: #{tpu_custom_call.1} parent=1 // pred_check_branch
      %40 = sbr.rel (0) target = $region21
    $region20: #{tpu_custom_call.1} parent=1 // pred_region
      %41 = dma.done [#allocation4], 128
    $region21: #{tpu_custom_call.1} parent=1 // pred_fallthru
      _
    // Predicated region
    $region22: #{tpu_custom_call.1} parent=1 // pred_check
      _
    $region23: #{tpu_custom_call.1} parent=1 // pred_check_branch
      %43 = sbr.rel (0) target = $region25
    $region24: #{tpu_custom_call.1} parent=1 // pred_region
      %44 = dma.done [#allocation7], 512
    $region25: #{tpu_custom_call.1} parent=1 // pred_fallthru
      _
    %v45 = vld [vmem:[#allocation3] sm:$0xff]
    %v46 = vld [vmem:[#allocation6] sm:$0xff]
    %v47 = vld [vmem:[#allocation6 + $0x8] sm:$0xff]
    %v48 = vld [vmem:[#allocation6 + $0x10] sm:$0xff]
    %v49 = vld [vmem:[#allocation6 + $0x18] sm:$0xff]
    %v50 = vld [vmem:[%s3] sm:$0x1]
    %v52 = vlaneseq
    %v53 = vshrl.u32 %v52, 7
    %v54 = vsub.s32 0, %v53
    %v55 = vrot.slane %v50, %v54
    %vm57 = vcmask 261120
    %v59 = vsel %vm57, %v45, 0
    %61 = vmatprep.subr.mxu0 0.0
    %62 = vmatpush1.msra.mxu0 %v46
    %63 = vmatprep.subr.mxu0 0.0
    %64 = vmatpush1.msra.mxu0 %v47
    %65 = vmatprep.subr.mxu0 0.0
    %66 = vmatpush1.msra.mxu0 %v48
    %67 = vmatprep.subr.mxu0 0.0
    %68 = vmatpush1.msra.mxu0 %v49
    %69 = vmatprep.subr.mxu0 0.0
    %70 = vmatpush1.msra.mxu0 0.0
    %71 = vmatprep.subr.mxu0 0.0
    %72 = vmatpush1.msra.mxu0 0.0
    %73 = vmatprep.subr.mxu0 0.0
    %74 = vmatpush1.msra.mxu0 0.0
    %75 = vmatprep.subr.mxu0 0.0
    %76 = vmatpush1.msra.mxu0 0.0
    %77 = vmatprep.subr.mxu0 0.0
    %78 = vmatpush1.msra.mxu0 0.0
    %79 = vmatprep.subr.mxu0 0.0
    %80 = vmatpush1.msra.mxu0 0.0
    %81 = vmatprep.subr.mxu0 0.0
    %82 = vmatpush1.msra.mxu0 0.0
    %83 = vmatprep.subr.mxu0 0.0
    %84 = vmatpush1.msra.mxu0 0.0
    %85 = vmatprep.subr.mxu0 0.0
    %86 = vmatpush1.msra.mxu0 0.0
    %87 = vmatprep.subr.mxu0 0.0
    %88 = vmatpush1.msra.mxu0 0.0
    %89 = vmatprep.subr.mxu0 0.0
    %90 = vmatpush1.msra.mxu0 0.0
    %91 = vmatprep.subr.mxu0 0.0
    %92 = vmatpush1.msra.mxu0 0.0
    %93 = vmatprep.subr.mxu0 0.0
    %94 = vmatpush1.msra.mxu0 0.0
    %95 = vmatprep.subr.mxu0 0.0
    %96 = vmatpush1.msra.mxu0 0.0
    %97 = vmatprep.subr.mxu0 0.0
    %98 = vmatpush1.msra.mxu0 0.0
    %99 = vmatprep.subr.mxu0 0.0
    %100 = vmatpush1.msra.mxu0 0.0
    %101 = vmatprep.subr.mxu0 0.0
    %102 = vmatpush1.msra.mxu0 0.0
    %103 = vmatprep.subr.mxu0 0.0
    %104 = vmatpush1.msra.mxu0 0.0
    %105 = vmatprep.subr.mxu0 0.0
    %106 = vmatpush1.msra.mxu0 0.0
    %107 = vmatprep.subr.mxu0 0.0
    %108 = vmatpush1.msra.mxu0 0.0
    %109 = vmatprep.subr.mxu0 0.0
    %110 = vmatpush1.msra.mxu0 0.0
    %111 = vmatprep.subr.mxu0 0.0
    %112 = vmatpush1.msra.mxu0 0.0
    %113 = vmatprep.subr.mxu0 0.0
    %114 = vmatpush1.msra.mxu0 0.0
    %115 = vmatprep.subr.mxu0 0.0
    %116 = vmatpush1.msra.mxu0 0.0
    %117 = vmatprep.subr.mxu0 0.0
    %118 = vmatpush1.msra.mxu0 0.0
    %119 = vmatprep.subr.mxu0 0.0
    %120 = vmatpush1.msra.mxu0 0.0
    %121 = vmatprep.subr.mxu0 0.0
    %122 = vmatpush1.msra.mxu0 0.0
    %123 = vmatprep.subr.mxu0 0.0
    %124 = vmatpush1.msra.mxu0 0.0
    %125 = vmatprep.mubr.f32.mxu0 0.0
    %126 = vmatmul.mubr.f32.gmra.mrb[0].mxu0 %v59
    %v127 = vpop.f32.mrb[0].mxu0
    %v128 = vadd.f32 %v55, %v127
    %v129 = vpop.f32.mrb[0].mxu0
    %130 = vdwg.mxu0
    %v131 = vtanh.pop %v128
    %132 = vrot.lane.b32.xlu0 %v45, 32
    %v133 = vpop.permute.xlu0 %132
    %v135 = vsel %vm57, %v45, %v133
    %s136 = sld [smem:[#allocation2]]
    %v137 = vstv %s136
    %v138 = vmul.f32 %v137, %v131
    %v139 = vadd.f32 %v138, %v135
    %vm140 = vcmask 523264
    %141 = vst.msk [vmem:[#allocation8] sm:$0xff] %vm140, %v139
    // Predicated region
    $region26: #{tpu_custom_call.1} parent=1 // pred_check
      _
    $region27: #{tpu_custom_call.1} parent=1 // pred_check_branch
      %143 = sbr.rel (0) target = $region29
    $region28: #{tpu_custom_call.1} parent=1 // pred_region
      %s145 = ssub.s32 128, 128
      %146 = vsyncadd [#allocation5], %s145
      %s148 = sshll.u32 [#allocation8], 4
      %s149 = int_to_ptr.vmem [resolvable:$true] %s148
      %151 = dma.vmem_to_hbm [thread:$0]  %s149, 128, %s4, [#allocation5]
    $region29: #{tpu_custom_call.1} parent=1 // pred_fallthru
      _
    // Predicated region
    $region30: #{tpu_custom_call.1} parent=1 // pred_check
      _
    $region31: #{tpu_custom_call.1} parent=1 // pred_check_branch
      %153 = sbr.rel (0) target = $region33
    $region32: #{tpu_custom_call.1} parent=1 // pred_region
      %154 = dma.done [#allocation5], 128
    $region33: #{tpu_custom_call.1} parent=1 // pred_fallthru
      _
    %155 = vsyncpa [#allocation4], 1
    %156 = vsyncpa [#allocation7], 1
    %157 = vsyncpa [#allocation5], 1

</llo_original>
